<compile_context>
chip_gen: v5e
topology: v5e:2x2
jax: 0.10.0
libtpu: 0.0.40
codegen_flags: <defaults>
</compile_context>

<pallas_src>
import functools

import jax
import jax.numpy as jnp
from jax import lax
from jax.experimental import pallas as pl
from jax.experimental.pallas import tpu as pltpu


def bert_embeddings_kernel(ids_ref,              # SMEM (B, S) int32  (scalar prefetch: word ids)
                           word_hbm,             # HBM  (V, H)        word table (manual DMA gather)
                           type_ref,             # VMEM (T, H)        token-type table (tiny, resident)
                           pos_ref,              # VMEM (S, H)        contiguous position rows
                           tts_ref,              # VMEM (1, S, 1) i32 token-type ids (sublane column)
                           gamma_ref, beta_ref,  # VMEM (1, H)
                           out_ref,              # VMEM (1, S, H)
                           wbuf,                 # VMEM scratch (nslots, chunk, H) word rows
                           sem,                  # DMA semaphores (nslots,)
                           *, eps, chunk, nslots):
    b = pl.program_id(0)
    _, S, H = out_ref.shape
    n_chunks = S // chunk
    T = type_ref.shape[0]

    # Hoisted small loads / broadcast sources (the loop body is an scf.for; keep them out).
    gamma = gamma_ref[...].astype(jnp.float32)               # (1, H)
    beta = beta_ref[...].astype(jnp.float32)                 # (1, H)
    if T == 2:
        t0 = type_ref[0, :].astype(jnp.float32)              # (H,)
        tdiff = type_ref[1, :].astype(jnp.float32) - t0      # (H,)
    else:
        trows = [type_ref[t, :].astype(jnp.float32) for t in range(T)]

    # ---- word-embedding gather: per-row DMAs from the HBM table, double-buffered chunks.
    def issue(c, slot):
        base = c * chunk
        for r in range(chunk):
            wid = ids_ref[b, base + r]
            pltpu.make_async_copy(word_hbm.at[pl.ds(wid, 1), :],
                                  wbuf.at[slot, pl.ds(r, 1), :],
                                  sem.at[slot]).start()

    def wait(slot):
        # Coalesced wait: one descriptor whose byte count equals the sum of the chunk
        # row copies issued into this slot (all rows signal the same per-slot semaphore).
        pltpu.make_async_copy(wbuf.at[slot], wbuf.at[slot], sem.at[slot]).wait()

    issue(0, 0)

    @pl.loop(0, n_chunks)
    def _(c):
        slot = (c % 2) if nslots == 2 else 0

        # Issue the next chunk's row DMAs *before* waiting on the current slot, so the
        # descriptors enter the DMA engine early and the SMEM id reads are not stalled
        # behind the semaphore wait (sst->sld forwarding stays intact).
        if n_chunks > 1:
            @pl.when(c + 1 < n_chunks)
            def _():
                issue(c + 1, 1 - slot)

        wait(slot)

        base = pl.multiple_of(c * chunk, chunk)

        # Token-type embedding for this chunk: tiny T -> pure VPU select, no gather.
        tid = tts_ref[0, pl.ds(base, chunk), :]               # (chunk, 1) int32
        if T == 2:
            tt = t0 + tid.astype(jnp.float32) * tdiff
        else:
            tt = jnp.zeros((chunk, H), jnp.float32)
            for t in range(T):
                tt = tt + jnp.where(tid == t, 1.0, 0.0) * trows[t]

        x = (wbuf[slot].astype(jnp.float32)
             + pos_ref[pl.ds(base, chunk), :].astype(jnp.float32)
             + tt)

        # Fused LayerNorm over hidden (f32), then one lane-dense (chunk, H) store.
        mean = jnp.mean(x, axis=-1, keepdims=True)
        cent = x - mean
        var = jnp.mean(cent * cent, axis=-1, keepdims=True)
        y = cent * lax.rsqrt(var + eps) * gamma + beta
        # Dropout: eval-mode identity (hidden_dropout_prob only applies in training).
        out_ref[0, pl.ds(base, chunk), :] = y.astype(out_ref.dtype)


def bert_embeddings(input_ids, token_type_ids, word_emb, type_emb, pos_emb,
                    gamma, beta, eps=1e-12, past_key_values_length=0, out_dtype=None):
    """Matches BertEmbeddings.forward with position_ids=None (absolute positions)."""
    B, S = input_ids.shape
    V, H = word_emb.shape
    T = type_emb.shape[0]
    out_dtype = word_emb.dtype if out_dtype is None else out_dtype

    if token_type_ids is None:
        token_type_ids = jnp.zeros((B, S), jnp.int32)

    # Module default: position_ids = arange(past, past + S) -> contiguous rows, one slice.
    # TODO(synk): arbitrary user-supplied position_ids would need a gather path (like word ids).
    pos_block = lax.dynamic_slice_in_dim(pos_emb, past_key_values_length, S, axis=0)

    # Gather chunk: as many row DMAs in flight as practical (latency hiding), sublane-aligned.
    # chunk = S for S <= 128; otherwise the largest divisor of S in {128, 64, 32, 16, 8}.
    if S <= 128:
        chunk = S
    else:
        chunk = next((c for c in (128, 64, 32, 16, 8) if S % c == 0), S)
    n_chunks = S // chunk
    nslots = 2 if n_chunks > 1 else 1

    kernel = functools.partial(bert_embeddings_kernel, eps=eps, chunk=chunk, nslots=nslots)

    grid_spec = pltpu.PrefetchScalarGridSpec(
        num_scalar_prefetch=1,            # input_ids -> SMEM, drives the word-row DMA gather
        grid=(B,),
        in_specs=[
            pl.BlockSpec(memory_space=pl.ANY),                     # word table stays in HBM
            pl.BlockSpec((T, H), lambda b, ids: (0, 0)),           # token-type table (tiny)
            pl.BlockSpec((S, H), lambda b, ids: (0, 0)),           # contiguous position rows
            pl.BlockSpec((1, S, 1), lambda b, ids: (b, 0, 0)),     # token-type ids (sublane column)
            pl.BlockSpec((1, H), lambda b, ids: (0, 0)),           # LN gamma
            pl.BlockSpec((1, H), lambda b, ids: (0, 0)),           # LN beta
        ],
        out_specs=pl.BlockSpec((1, S, H), lambda b, ids: (b, 0, 0)),
        scratch_shapes=[
            pltpu.VMEM((nslots, chunk, H), word_emb.dtype),        # double-buffered word rows
            pltpu.SemaphoreType.DMA((nslots,)),                    # one coalesced sem per slot
        ],
    )
    # TODO(synk): for v7x small-batch inference, add a second parallel grid axis over S-tiles
    # so both TensorCores are fed; on single-TC v5e/v6e it is pure per-step overhead.

    return pl.pallas_call(
        kernel,
        out_shape=jax.ShapeDtypeStruct((B, S, H), out_dtype),
        grid_spec=grid_spec,
        compiler_params=pltpu.CompilerParams(dimension_semantics=("parallel",)),
    )(input_ids.astype(jnp.int32),
      word_emb, type_emb, pos_block,
      token_type_ids.astype(jnp.int32).reshape(B, S, 1),
      gamma.reshape(1, H), beta.reshape(1, H))


def reference(input_ids, token_type_ids, position_ids,
              word_emb, type_emb, pos_emb, gamma, beta, eps=1e-12):
    x = word_emb[input_ids] + type_emb[token_type_ids] + pos_emb[position_ids]
    mean = jnp.mean(x, axis=-1, keepdims=True)
    var = jnp.mean((x - mean) ** 2, axis=-1, keepdims=True)
    return (x - mean) * lax.rsqrt(var + eps) * gamma + beta


if __name__ == "__main__":
    # Synthetic BERT config (small)
    vocab_size = 64
    hidden_size = 128
    max_position_embeddings = 16
    type_vocab_size = 2
    pad_token_id = 0
    layer_norm_eps = 1e-12
    B, S = 2, 8

    key = jax.random.PRNGKey(0)
    k_ids, k_tts, k_w, k_t, k_p = jax.random.split(key, 5)

    # Deterministic params (padding row zeroed; LayerNorm weight=1, bias=0 as nn defaults).
    word_emb = 0.02 * jax.random.normal(k_w, (vocab_size, hidden_size), jnp.float32)
    word_emb = word_emb.at[pad_token_id].set(0.0)
    type_emb = 0.02 * jax.random.normal(k_t, (type_vocab_size, hidden_size), jnp.float32)
    pos_emb = 0.02 * jax.random.normal(k_p, (max_position_embeddings, hidden_size), jnp.float32)
    gamma = jnp.ones((hidden_size,), jnp.float32)
    beta = jnp.zeros((hidden_size,), jnp.float32)

    # Inputs
    input_ids = jax.random.randint(k_ids, (B, S), 1, vocab_size, dtype=jnp.int32)
    token_type_ids = jax.random.randint(k_tts, (B, S), 0, type_vocab_size, dtype=jnp.int32)
    position_ids = jnp.broadcast_to(jnp.arange(S, dtype=jnp.int32), (B, S))  # module default

    out = bert_embeddings(input_ids, token_type_ids,
                          word_emb, type_emb, pos_emb, gamma, beta,
                          eps=layer_norm_eps, past_key_values_length=0)
    out = jax.block_until_ready(out)

    ref = reference(input_ids, token_type_ids, position_ids,
                    word_emb, type_emb, pos_emb, gamma, beta, eps=layer_norm_eps)
    assert out.shape == (B, S, hidden_size)
    assert jnp.allclose(out, ref, atol=1e-5, rtol=1e-5), "mismatch vs pure-JAX reference"

    print("KERNEL_OK")
</pallas_src>

<mosaic_0001>
module attributes {stable_mosaic.version = 11 : i64} {
  func.func @bert_embeddings_kernel(%arg0: i32, %arg1: memref<2x8xi32, #tpu.memory_space<smem>>, %arg2: memref<64x128xf32, #tpu.memory_space<any>>, %arg3: memref<2x128xf32, #tpu.memory_space<vmem>>, %arg4: memref<8x128xf32, #tpu.memory_space<vmem>>, %arg5: memref<1x8x1xi32, #tpu.memory_space<vmem>>, %arg6: memref<1x128xf32, #tpu.memory_space<vmem>>, %arg7: memref<1x128xf32, #tpu.memory_space<vmem>>, %arg8: memref<1x8x128xf32, #tpu.memory_space<vmem>>, %arg9: memref<1x8x128xf32, #tpu.memory_space<vmem>>, %arg10: memref<1x!tpu.dma_semaphore, #tpu.memory_space<semaphore_mem>>) attributes {dimension_semantics = [#tpu.dimension_semantics<parallel>], iteration_bounds = array<i64: 2>, scalar_prefetch = 1 : i64, scratch_operands = 2 : i64, tpu.core_type = #tpu.core_type<tc>, window_params = [{}, {pipeline_mode = #tpu.pipeline_mode<synchronous>, transform_indices = @transform_1, window_bounds = array<i64: 2, 128>}, {pipeline_mode = #tpu.pipeline_mode<synchronous>, transform_indices = @transform_2, window_bounds = array<i64: 8, 128>}, {transform_indices = @transform_3, window_bounds = array<i64: 1, 8, 1>}, {pipeline_mode = #tpu.pipeline_mode<synchronous>, transform_indices = @transform_4, window_bounds = array<i64: 1, 128>}, {pipeline_mode = #tpu.pipeline_mode<synchronous>, transform_indices = @transform_5, window_bounds = array<i64: 1, 128>}, {transform_indices = @transform_6, window_bounds = array<i64: 1, 8, 128>}]} {
    %c0 = arith.constant 0 : index
    %c0_0 = arith.constant 0 : index
    %0 = vector.load %arg6[%c0, %c0_0] : memref<1x128xf32, #tpu.memory_space<vmem>>, vector<1x128xf32>
    %c0_1 = arith.constant 0 : index
    %c0_2 = arith.constant 0 : index
    %1 = vector.load %arg7[%c0_1, %c0_2] : memref<1x128xf32, #tpu.memory_space<vmem>>, vector<1x128xf32>
    %c0_3 = arith.constant 0 : index
    %c0_4 = arith.constant 0 : index
    %2 = vector.load %arg3[%c0_3, %c0_4] : memref<2x128xf32, #tpu.memory_space<vmem>>, vector<1x128xf32>
    %3 = vector.shape_cast %2 : vector<1x128xf32> to vector<128xf32>
    %c1 = arith.constant 1 : index
    %c0_5 = arith.constant 0 : index
    %4 = vector.load %arg3[%c1, %c0_5] : memref<2x128xf32, #tpu.memory_space<vmem>>, vector<1x128xf32>
    %5 = vector.shape_cast %4 : vector<1x128xf32> to vector<128xf32>
    %6 = arith.subf %5, %3 : vector<128xf32>
    %7 = arith.index_cast %arg0 : i32 to index
    %c0_6 = arith.constant 0 : index
    %8 = memref.load %arg1[%7, %c0_6] : memref<2x8xi32, #tpu.memory_space<smem>>
    %c0_i32 = arith.constant 0 : i32
    %c0_i32_7 = arith.constant 0 : i32
    %c0_i32_8 = arith.constant 0 : i32
    %9 = tpu.memref_slice %arg2[%8, %c0_i32_8] : memref<64x128xf32, #tpu.memory_space<any>> -> memref<1x128xf32, #tpu.memory_space<any>>
    %c0_i32_9 = arith.constant 0 : i32
    %c0_i32_10 = arith.constant 0 : i32
    %10 = tpu.memref_slice %arg9[%c0_i32, %c0_i32_9, %c0_i32_10] : memref<1x8x128xf32, #tpu.memory_space<vmem>> -> memref<1x1x128xf32, #tpu.memory_space<vmem>>
    %11 = tpu.memref_squeeze %10 : memref<1x1x128xf32, #tpu.memory_space<vmem>> -> memref<1x128xf32, #tpu.memory_space<vmem>>
    %12 = tpu.memref_slice %arg10[%c0_i32_7] : memref<1x!tpu.dma_semaphore, #tpu.memory_space<semaphore_mem>> -> memref<1x!tpu.dma_semaphore, #tpu.memory_space<semaphore_mem>>
    %13 = tpu.memref_squeeze %12 : memref<1x!tpu.dma_semaphore, #tpu.memory_space<semaphore_mem>> -> memref<!tpu.dma_semaphore, #tpu.memory_space<semaphore_mem>>
    tpu.enqueue_dma source(%9 : memref<1x128xf32, #tpu.memory_space<any>>) target(%11 : memref<1x128xf32, #tpu.memory_space<vmem>>) target_semaphore(%13 : memref<!tpu.dma_semaphore, #tpu.memory_space<semaphore_mem>>)
    %14 = arith.index_cast %arg0 : i32 to index
    %c1_11 = arith.constant 1 : index
    %15 = memref.load %arg1[%14, %c1_11] : memref<2x8xi32, #tpu.memory_space<smem>>
    %c0_i32_12 = arith.constant 0 : i32
    %c0_i32_13 = arith.constant 0 : i32
    %c0_i32_14 = arith.constant 0 : i32
    %16 = tpu.memref_slice %arg2[%15, %c0_i32_14] : memref<64x128xf32, #tpu.memory_space<any>> -> memref<1x128xf32, #tpu.memory_space<any>>
    %c1_i32 = arith.constant 1 : i32
    %c0_i32_15 = arith.constant 0 : i32
    %17 = tpu.memref_slice %arg9[%c0_i32_12, %c1_i32, %c0_i32_15] : memref<1x8x128xf32, #tpu.memory_space<vmem>> -> memref<1x1x128xf32, #tpu.memory_space<vmem>>
    %18 = tpu.memref_squeeze %17 : memref<1x1x128xf32, #tpu.memory_space<vmem>> -> memref<1x128xf32, #tpu.memory_space<vmem>>
    %19 = tpu.memref_slice %arg10[%c0_i32_13] : memref<1x!tpu.dma_semaphore, #tpu.memory_space<semaphore_mem>> -> memref<1x!tpu.dma_semaphore, #tpu.memory_space<semaphore_mem>>
    %20 = tpu.memref_squeeze %19 : memref<1x!tpu.dma_semaphore, #tpu.memory_space<semaphore_mem>> -> memref<!tpu.dma_semaphore, #tpu.memory_space<semaphore_mem>>
    tpu.enqueue_dma source(%16 : memref<1x128xf32, #tpu.memory_space<any>>) target(%18 : memref<1x128xf32, #tpu.memory_space<vmem>>) target_semaphore(%20 : memref<!tpu.dma_semaphore, #tpu.memory_space<semaphore_mem>>)
    %21 = arith.index_cast %arg0 : i32 to index
    %c2 = arith.constant 2 : index
    %22 = memref.load %arg1[%21, %c2] : memref<2x8xi32, #tpu.memory_space<smem>>
    %c0_i32_16 = arith.constant 0 : i32
    %c0_i32_17 = arith.constant 0 : i32
    %c0_i32_18 = arith.constant 0 : i32
    %23 = tpu.memref_slice %arg2[%22, %c0_i32_18] : memref<64x128xf32, #tpu.memory_space<any>> -> memref<1x128xf32, #tpu.memory_space<any>>
    %c2_i32 = arith.constant 2 : i32
    %c0_i32_19 = arith.constant 0 : i32
    %24 = tpu.memref_slice %arg9[%c0_i32_16, %c2_i32, %c0_i32_19] : memref<1x8x128xf32, #tpu.memory_space<vmem>> -> memref<1x1x128xf32, #tpu.memory_space<vmem>>
    %25 = tpu.memref_squeeze %24 : memref<1x1x128xf32, #tpu.memory_space<vmem>> -> memref<1x128xf32, #tpu.memory_space<vmem>>
    %26 = tpu.memref_slice %arg10[%c0_i32_17] : memref<1x!tpu.dma_semaphore, #tpu.memory_space<semaphore_mem>> -> memref<1x!tpu.dma_semaphore, #tpu.memory_space<semaphore_mem>>
    %27 = tpu.memref_squeeze %26 : memref<1x!tpu.dma_semaphore, #tpu.memory_space<semaphore_mem>> -> memref<!tpu.dma_semaphore, #tpu.memory_space<semaphore_mem>>
    tpu.enqueue_dma source(%23 : memref<1x128xf32, #tpu.memory_space<any>>) target(%25 : memref<1x128xf32, #tpu.memory_space<vmem>>) target_semaphore(%27 : memref<!tpu.dma_semaphore, #tpu.memory_space<semaphore_mem>>)
    %28 = arith.index_cast %arg0 : i32 to index
    %c3 = arith.constant 3 : index
    %29 = memref.load %arg1[%28, %c3] : memref<2x8xi32, #tpu.memory_space<smem>>
    %c0_i32_20 = arith.constant 0 : i32
    %c0_i32_21 = arith.constant 0 : i32
    %c0_i32_22 = arith.constant 0 : i32
    %30 = tpu.memref_slice %arg2[%29, %c0_i32_22] : memref<64x128xf32, #tpu.memory_space<any>> -> memref<1x128xf32, #tpu.memory_space<any>>
    %c3_i32 = arith.constant 3 : i32
    %c0_i32_23 = arith.constant 0 : i32
    %31 = tpu.memref_slice %arg9[%c0_i32_20, %c3_i32, %c0_i32_23] : memref<1x8x128xf32, #tpu.memory_space<vmem>> -> memref<1x1x128xf32, #tpu.memory_space<vmem>>
    %32 = tpu.memref_squeeze %31 : memref<1x1x128xf32, #tpu.memory_space<vmem>> -> memref<1x128xf32, #tpu.memory_space<vmem>>
    %33 = tpu.memref_slice %arg10[%c0_i32_21] : memref<1x!tpu.dma_semaphore, #tpu.memory_space<semaphore_mem>> -> memref<1x!tpu.dma_semaphore, #tpu.memory_space<semaphore_mem>>
    %34 = tpu.memref_squeeze %33 : memref<1x!tpu.dma_semaphore, #tpu.memory_space<semaphore_mem>> -> memref<!tpu.dma_semaphore, #tpu.memory_space<semaphore_mem>>
    tpu.enqueue_dma source(%30 : memref<1x128xf32, #tpu.memory_space<any>>) target(%32 : memref<1x128xf32, #tpu.memory_space<vmem>>) target_semaphore(%34 : memref<!tpu.dma_semaphore, #tpu.memory_space<semaphore_mem>>)
    %35 = arith.index_cast %arg0 : i32 to index
    %c4 = arith.constant 4 : index
    %36 = memref.load %arg1[%35, %c4] : memref<2x8xi32, #tpu.memory_space<smem>>
    %c0_i32_24 = arith.constant 0 : i32
    %c0_i32_25 = arith.constant 0 : i32
    %c0_i32_26 = arith.constant 0 : i32
    %37 = tpu.memref_slice %arg2[%36, %c0_i32_26] : memref<64x128xf32, #tpu.memory_space<any>> -> memref<1x128xf32, #tpu.memory_space<any>>
    %c4_i32 = arith.constant 4 : i32
    %c0_i32_27 = arith.constant 0 : i32
    %38 = tpu.memref_slice %arg9[%c0_i32_24, %c4_i32, %c0_i32_27] : memref<1x8x128xf32, #tpu.memory_space<vmem>> -> memref<1x1x128xf32, #tpu.memory_space<vmem>>
    %39 = tpu.memref_squeeze %38 : memref<1x1x128xf32, #tpu.memory_space<vmem>> -> memref<1x128xf32, #tpu.memory_space<vmem>>
    %40 = tpu.memref_slice %arg10[%c0_i32_25] : memref<1x!tpu.dma_semaphore, #tpu.memory_space<semaphore_mem>> -> memref<1x!tpu.dma_semaphore, #tpu.memory_space<semaphore_mem>>
    %41 = tpu.memref_squeeze %40 : memref<1x!tpu.dma_semaphore, #tpu.memory_space<semaphore_mem>> -> memref<!tpu.dma_semaphore, #tpu.memory_space<semaphore_mem>>
    tpu.enqueue_dma source(%37 : memref<1x128xf32, #tpu.memory_space<any>>) target(%39 : memref<1x128xf32, #tpu.memory_space<vmem>>) target_semaphore(%41 : memref<!tpu.dma_semaphore, #tpu.memory_space<semaphore_mem>>)
    %42 = arith.index_cast %arg0 : i32 to index
    %c5 = arith.constant 5 : index
    %43 = memref.load %arg1[%42, %c5] : memref<2x8xi32, #tpu.memory_space<smem>>
    %c0_i32_28 = arith.constant 0 : i32
    %c0_i32_29 = arith.constant 0 : i32
    %c0_i32_30 = arith.constant 0 : i32
    %44 = tpu.memref_slice %arg2[%43, %c0_i32_30] : memref<64x128xf32, #tpu.memory_space<any>> -> memref<1x128xf32, #tpu.memory_space<any>>
    %c5_i32 = arith.constant 5 : i32
    %c0_i32_31 = arith.constant 0 : i32
    %45 = tpu.memref_slice %arg9[%c0_i32_28, %c5_i32, %c0_i32_31] : memref<1x8x128xf32, #tpu.memory_space<vmem>> -> memref<1x1x128xf32, #tpu.memory_space<vmem>>
    %46 = tpu.memref_squeeze %45 : memref<1x1x128xf32, #tpu.memory_space<vmem>> -> memref<1x128xf32, #tpu.memory_space<vmem>>
    %47 = tpu.memref_slice %arg10[%c0_i32_29] : memref<1x!tpu.dma_semaphore, #tpu.memory_space<semaphore_mem>> -> memref<1x!tpu.dma_semaphore, #tpu.memory_space<semaphore_mem>>
    %48 = tpu.memref_squeeze %47 : memref<1x!tpu.dma_semaphore, #tpu.memory_space<semaphore_mem>> -> memref<!tpu.dma_semaphore, #tpu.memory_space<semaphore_mem>>
    tpu.enqueue_dma source(%44 : memref<1x128xf32, #tpu.memory_space<any>>) target(%46 : memref<1x128xf32, #tpu.memory_space<vmem>>) target_semaphore(%48 : memref<!tpu.dma_semaphore, #tpu.memory_space<semaphore_mem>>)
    %49 = arith.index_cast %arg0 : i32 to index
    %c6 = arith.constant 6 : index
    %50 = memref.load %arg1[%49, %c6] : memref<2x8xi32, #tpu.memory_space<smem>>
    %c0_i32_32 = arith.constant 0 : i32
    %c0_i32_33 = arith.constant 0 : i32
    %c0_i32_34 = arith.constant 0 : i32
    %51 = tpu.memref_slice %arg2[%50, %c0_i32_34] : memref<64x128xf32, #tpu.memory_space<any>> -> memref<1x128xf32, #tpu.memory_space<any>>
    %c6_i32 = arith.constant 6 : i32
    %c0_i32_35 = arith.constant 0 : i32
    %52 = tpu.memref_slice %arg9[%c0_i32_32, %c6_i32, %c0_i32_35] : memref<1x8x128xf32, #tpu.memory_space<vmem>> -> memref<1x1x128xf32, #tpu.memory_space<vmem>>
    %53 = tpu.memref_squeeze %52 : memref<1x1x128xf32, #tpu.memory_space<vmem>> -> memref<1x128xf32, #tpu.memory_space<vmem>>
    %54 = tpu.memref_slice %arg10[%c0_i32_33] : memref<1x!tpu.dma_semaphore, #tpu.memory_space<semaphore_mem>> -> memref<1x!tpu.dma_semaphore, #tpu.memory_space<semaphore_mem>>
    %55 = tpu.memref_squeeze %54 : memref<1x!tpu.dma_semaphore, #tpu.memory_space<semaphore_mem>> -> memref<!tpu.dma_semaphore, #tpu.memory_space<semaphore_mem>>
    tpu.enqueue_dma source(%51 : memref<1x128xf32, #tpu.memory_space<any>>) target(%53 : memref<1x128xf32, #tpu.memory_space<vmem>>) target_semaphore(%55 : memref<!tpu.dma_semaphore, #tpu.memory_space<semaphore_mem>>)
    %56 = arith.index_cast %arg0 : i32 to index
    %c7 = arith.constant 7 : index
    %57 = memref.load %arg1[%56, %c7] : memref<2x8xi32, #tpu.memory_space<smem>>
    %c0_i32_36 = arith.constant 0 : i32
    %c0_i32_37 = arith.constant 0 : i32
    %c0_i32_38 = arith.constant 0 : i32
    %58 = tpu.memref_slice %arg2[%57, %c0_i32_38] : memref<64x128xf32, #tpu.memory_space<any>> -> memref<1x128xf32, #tpu.memory_space<any>>
    %c7_i32 = arith.constant 7 : i32
    %c0_i32_39 = arith.constant 0 : i32
    %59 = tpu.memref_slice %arg9[%c0_i32_36, %c7_i32, %c0_i32_39] : memref<1x8x128xf32, #tpu.memory_space<vmem>> -> memref<1x1x128xf32, #tpu.memory_space<vmem>>
    %60 = tpu.memref_squeeze %59 : memref<1x1x128xf32, #tpu.memory_space<vmem>> -> memref<1x128xf32, #tpu.memory_space<vmem>>
    %61 = tpu.memref_slice %arg10[%c0_i32_37] : memref<1x!tpu.dma_semaphore, #tpu.memory_space<semaphore_mem>> -> memref<1x!tpu.dma_semaphore, #tpu.memory_space<semaphore_mem>>
    %62 = tpu.memref_squeeze %61 : memref<1x!tpu.dma_semaphore, #tpu.memory_space<semaphore_mem>> -> memref<!tpu.dma_semaphore, #tpu.memory_space<semaphore_mem>>
    tpu.enqueue_dma source(%58 : memref<1x128xf32, #tpu.memory_space<any>>) target(%60 : memref<1x128xf32, #tpu.memory_space<vmem>>) target_semaphore(%62 : memref<!tpu.dma_semaphore, #tpu.memory_space<semaphore_mem>>)
    %c0_i32_40 = arith.constant 0 : i32
    %c1_i32_41 = arith.constant 1 : i32
    %63 = arith.muli %c0_i32_40, %c1_i32_41 : i32
    %c0_i32_42 = arith.constant 0 : i32
    %64 = arith.addi %c0_i32_42, %63 : i32
    %c0_i32_43 = arith.constant 0 : i32
    %c0_i32_44 = arith.constant 0 : i32
    %c0_i32_45 = arith.constant 0 : i32
    %c0_i32_46 = arith.constant 0 : i32
    %c0_i32_47 = arith.constant 0 : i32
    %65 = tpu.memref_slice %arg9[%c0_i32_43, %c0_i32_46, %c0_i32_47] : memref<1x8x128xf32, #tpu.memory_space<vmem>> -> memref<1x8x128xf32, #tpu.memory_space<vmem>>
    %66 = tpu.memref_squeeze %65 : memref<1x8x128xf32, #tpu.memory_space<vmem>> -> memref<8x128xf32, #tpu.memory_space<vmem>>
    %c0_i32_48 = arith.constant 0 : i32
    %c0_i32_49 = arith.constant 0 : i32
    %67 = tpu.memref_slice %arg9[%c0_i32_44, %c0_i32_48, %c0_i32_49] : memref<1x8x128xf32, #tpu.memory_space<vmem>> -> memref<1x8x128xf32, #tpu.memory_space<vmem>>
    %68 = tpu.memref_squeeze %67 : memref<1x8x128xf32, #tpu.memory_space<vmem>> -> memref<8x128xf32, #tpu.memory_space<vmem>>
    %69 = tpu.memref_slice %arg10[%c0_i32_45] : memref<1x!tpu.dma_semaphore, #tpu.memory_space<semaphore_mem>> -> memref<1x!tpu.dma_semaphore, #tpu.memory_space<semaphore_mem>>
    %70 = tpu.memref_squeeze %69 : memref<1x!tpu.dma_semaphore, #tpu.memory_space<semaphore_mem>> -> memref<!tpu.dma_semaphore, #tpu.memory_space<semaphore_mem>>
    tpu.wait_dma2 semaphore(%70 : memref<!tpu.dma_semaphore, #tpu.memory_space<semaphore_mem>>) src(%66 : memref<8x128xf32, #tpu.memory_space<vmem>>) dst(%68 : memref<8x128xf32, #tpu.memory_space<vmem>>)
    %c8_i32 = arith.constant 8 : i32
    %71 = arith.muli %64, %c8_i32 : i32
    %72 = tpu.assume_multiple %71, 8 : i32
    %c0_50 = arith.constant 0 : index
    %73 = arith.index_cast %72 : i32 to index
    %c0_51 = arith.constant 0 : index
    %74 = vector.load %arg5[%c0_50, %73, %c0_51] : memref<1x8x1xi32, #tpu.memory_space<vmem>>, vector<1x8x1xi32>
    %75 = vector.shape_cast %74 : vector<1x8x1xi32> to vector<8x1xi32>
    %76 = arith.sitofp %75 : vector<8x1xi32> to vector<8x1xf32>
    %77 = vector.shape_cast %6 : vector<128xf32> to vector<1x128xf32>
    %78 = vector.broadcast %76 : vector<8x1xf32> to vector<8x128xf32>
    %79 = vector.broadcast %77 : vector<1x128xf32> to vector<8x128xf32>
    %80 = arith.mulf %78, %79 : vector<8x128xf32>
    %81 = vector.shape_cast %3 : vector<128xf32> to vector<1x128xf32>
    %82 = vector.broadcast %81 : vector<1x128xf32> to vector<8x128xf32>
    %83 = arith.addf %82, %80 : vector<8x128xf32>
    %c0_52 = arith.constant 0 : index
    %c0_53 = arith.constant 0 : index
    %c0_54 = arith.constant 0 : index
    %84 = vector.load %arg9[%c0_52, %c0_53, %c0_54] : memref<1x8x128xf32, #tpu.memory_space<vmem>>, vector<1x8x128xf32>
    %85 = vector.shape_cast %84 : vector<1x8x128xf32> to vector<8x128xf32>
    %86 = arith.index_cast %72 : i32 to index
    %c0_55 = arith.constant 0 : index
    %87 = vector.load %arg4[%86, %c0_55] : memref<8x128xf32, #tpu.memory_space<vmem>>, vector<8x128xf32>
    %88 = arith.addf %85, %87 : vector<8x128xf32>
    %89 = arith.addf %88, %83 : vector<8x128xf32>
    %cst = arith.constant dense<0.000000e+00> : vector<8xf32>
    %90 = vector.multi_reduction <add>, %89, %cst [1] : vector<8x128xf32> to vector<8xf32>
    %91 = vector.shape_cast %90 : vector<8xf32> to vector<8x1xf32>
    %cst_56 = arith.constant 1.280000e+02 : f32
    %92 = vector.broadcast %cst_56 : f32 to vector<8x1xf32>
    %93 = arith.divf %91, %92 : vector<8x1xf32>
    %94 = vector.broadcast %93 : vector<8x1xf32> to vector<8x128xf32>
    %95 = arith.subf %89, %94 : vector<8x128xf32>
    %96 = arith.mulf %95, %95 : vector<8x128xf32>
    %cst_57 = arith.constant dense<0.000000e+00> : vector<8xf32>
    %97 = vector.multi_reduction <add>, %96, %cst_57 [1] : vector<8x128xf32> to vector<8xf32>
    %98 = vector.shape_cast %97 : vector<8xf32> to vector<8x1xf32>
    %cst_58 = arith.constant 1.280000e+02 : f32
    %99 = vector.broadcast %cst_58 : f32 to vector<8x1xf32>
    %100 = arith.divf %98, %99 : vector<8x1xf32>
    %cst_59 = arith.constant 9.99999996E-13 : f32
    %101 = vector.broadcast %cst_59 : f32 to vector<8x1xf32>
    %102 = arith.addf %100, %101 : vector<8x1xf32>
    %103 = math.rsqrt %102 : vector<8x1xf32>
    %104 = vector.broadcast %103 : vector<8x1xf32> to vector<8x128xf32>
    %105 = arith.mulf %95, %104 : vector<8x128xf32>
    %106 = vector.broadcast %0 : vector<1x128xf32> to vector<8x128xf32>
    %107 = arith.mulf %105, %106 : vector<8x128xf32>
    %108 = vector.broadcast %1 : vector<1x128xf32> to vector<8x128xf32>
    %109 = arith.addf %107, %108 : vector<8x128xf32>
    %c0_60 = arith.constant 0 : index
    %110 = arith.index_cast %72 : i32 to index
    %c0_61 = arith.constant 0 : index
    %111 = vector.load %arg8[%c0_60, %110, %c0_61] : memref<1x8x128xf32, #tpu.memory_space<vmem>>, vector<1x8x128xf32>
    %112 = vector.shape_cast %111 : vector<1x8x128xf32> to vector<8x128xf32>
    %113 = vector.shape_cast %109 : vector<8x128xf32> to vector<1x8x128xf32>
    tpu.vector_store %arg8[%c0_60, %110, %c0_61], %113 {strides = array<i32>} : memref<1x8x128xf32, #tpu.memory_space<vmem>>, vector<1x8x128xf32>,
    %c1_i32_62 = arith.constant 1 : i32
    return
  }
  func.func @transform_1(%arg0: i32, %arg1: memref<2x8xi32, #tpu.memory_space<smem>>) -> (i32, i32) {
    %c0_i32 = arith.constant 0 : i32
    %c0_i32_0 = arith.constant 0 : i32
    %c0_i32_1 = arith.constant 0 : i32
    return %c0_i32, %c0_i32_0 : i32, i32
  }
  func.func @transform_2(%arg0: i32, %arg1: memref<2x8xi32, #tpu.memory_space<smem>>) -> (i32, i32) {
    %c0_i32 = arith.constant 0 : i32
    %c0_i32_0 = arith.constant 0 : i32
    %c0_i32_1 = arith.constant 0 : i32
    return %c0_i32, %c0_i32_0 : i32, i32
  }
  func.func @transform_3(%arg0: i32, %arg1: memref<2x8xi32, #tpu.memory_space<smem>>) -> (i32, i32, i32) {
    %c0_i32 = arith.constant 0 : i32
    %c0_i32_0 = arith.constant 0 : i32
    %c0_i32_1 = arith.constant 0 : i32
    return %arg0, %c0_i32, %c0_i32_0 : i32, i32, i32
  }
  func.func @transform_4(%arg0: i32, %arg1: memref<2x8xi32, #tpu.memory_space<smem>>) -> (i32, i32) {
    %c0_i32 = arith.constant 0 : i32
    %c0_i32_0 = arith.constant 0 : i32
    %c0_i32_1 = arith.constant 0 : i32
    return %c0_i32, %c0_i32_0 : i32, i32
  }
  func.func @transform_5(%arg0: i32, %arg1: memref<2x8xi32, #tpu.memory_space<smem>>) -> (i32, i32) {
    %c0_i32 = arith.constant 0 : i32
    %c0_i32_0 = arith.constant 0 : i32
    %c0_i32_1 = arith.constant 0 : i32
    return %c0_i32, %c0_i32_0 : i32, i32
  }
  func.func @transform_6(%arg0: i32, %arg1: memref<2x8xi32, #tpu.memory_space<smem>>) -> (i32, i32, i32) {
    %c0_i32 = arith.constant 0 : i32
    %c0_i32_0 = arith.constant 0 : i32
    %c0_i32_1 = arith.constant 0 : i32
    return %arg0, %c0_i32, %c0_i32_0 : i32, i32, i32
  }
}

</mosaic_0001>

<llo_original>
// kernel: tpu_custom_call.1
$region0: #{tpu_custom_call.1}
  #allocation0 [shape = 'u32[]', space=smem, size = 0x4, offset = 0x4, fixed_abs, tag = 'smem constant byte address 0x4 - core index']
  #allocation1 [shape = 'u32[72,128]{1,0:T(1,128)}', space=vmem, size = 0x9000, scoped, tag = 'internal scratch']
  #allocation2 [shape = 'f32[1,8,128]{2,1,0:T(8,128)}', space=vmem, size = 0x1000, scoped, tag = 'scratch operand']
  #allocation3 [shape = 's32[1]{0}', space=sflag, size = 0x4, scoped, tag = 'scratch operand']
  #allocation4 [shape = 's32[1]{0}', space=sflag, size = 0x4, scoped, tag = 'scoped memory for tpu_custom_call.1']
  #allocation5 [shape = 'u8[1024]{0}', space=smem, size = 0x400, scoped, tag = 'prefetched SMEM operand 0']
  #allocation8 [shape = 's32[]', space=sflag, size = 0x4, offset = 0, fixed_abs, tag = 'sflag constant byte address 0x0 - dummy sync flag']
  #allocation9 [shape = 's32[]', space=sflag, size = 0x4, offset = 0, fixed_abs, tag = 'sflag constant byte address 0x0 - dummy sync flag']
  #allocation10 [shape = 'u32[]', space=smem, size = 0x4, offset = 0x44, fixed_abs, tag = 'smem constant byte address 0x44 - assertion arg 0']
  #allocation11 [shape = 'u32[]', space=smem, size = 0x4, offset = 0x48, fixed_abs, tag = 'smem constant byte address 0x48 - assertion arg 1']
  #allocation12 [shape = 's32[]', space=sflag, size = 0x4, offset = 0, fixed_abs, tag = 'sflag constant byte address 0x0 - dummy sync flag']
  #allocation13 [shape = 's32[]', space=sflag, size = 0x4, offset = 0, fixed_abs, tag = 'sflag constant byte address 0x0 - dummy sync flag']
  #allocation14 [shape = 's32[]', space=sflag, size = 0x4, offset = 0, fixed_abs, tag = 'sflag constant byte address 0x0 - dummy sync flag']
  #allocation15 [shape = 's32[]', space=sflag, size = 0x4, offset = 0, fixed_abs, tag = 'sflag constant byte address 0x0 - dummy sync flag']
  #allocation16 [shape = 's32[]', space=sflag, size = 0x4, offset = 0, fixed_abs, tag = 'sflag constant byte address 0x0 - dummy sync flag']
  #allocation17 [shape = 's32[]', space=sflag, size = 0x4, offset = 0, fixed_abs, tag = 'sflag constant byte address 0x0 - dummy sync flag']
  #allocation18 [shape = 's32[]', space=sflag, size = 0x4, offset = 0, fixed_abs, tag = 'sflag constant byte address 0x0 - dummy sync flag']
  #allocation19 [shape = 's32[]', space=sflag, size = 0x4, offset = 0, fixed_abs, tag = 'sflag constant byte address 0x0 - dummy sync flag']
  #allocation20 [shape = 's32[]', space=sflag, size = 0x4, offset = 0, fixed_abs, tag = 'sflag constant byte address 0x0 - dummy sync flag']
  #allocation21 [shape = 's32[]', space=sflag, size = 0x4, offset = 0, fixed_abs, tag = 'sflag constant byte address 0x0 - dummy sync flag']
  #allocation22 [shape = 's32[]', space=sflag, size = 0x4, offset = 0, fixed_abs, tag = 'sflag constant byte address 0x0 - dummy sync flag']
  #allocation23 [shape = 's32[]', space=sflag, size = 0x4, offset = 0, fixed_abs, tag = 'sflag constant byte address 0x0 - dummy sync flag']
  #allocation24 [shape = 's32[]', space=sflag, size = 0x4, offset = 0, fixed_abs, tag = 'sflag constant byte address 0x0 - dummy sync flag']
  #allocation25 [shape = 's32[]', space=sflag, size = 0x4, offset = 0, fixed_abs, tag = 'sflag constant byte address 0x0 - dummy sync flag']
  %s0 = inlined_call_operand.vmem [shape: s32[2,8], index: 0, kind: input, shape index: {}]
  %s1 = inlined_call_operand.hbm [shape: f32[64,128], index: 1, kind: input, shape index: {}]
  %s2 = inlined_call_operand.vmem [shape: f32[2,128], index: 2, kind: input, shape index: {}]
  %s3 = inlined_call_operand.vmem [shape: f32[8,128], index: 3, kind: input, shape index: {}]
  %s4 = inlined_call_operand.vmem [shape: s32[2,8,1], index: 4, kind: input, shape index: {}]
  %s5 = inlined_call_operand.vmem [shape: f32[1,128], index: 5, kind: input, shape index: {}]
  %s6 = inlined_call_operand.vmem [shape: f32[1,128], index: 6, kind: input, shape index: {}]
  %s7 = inlined_call_operand.hbm [shape: f32[2,8,128], index: 7, kind: output, shape index: {}]
  %s8 = sld [smem:[#allocation0]]
  $region85: #{tpu_custom_call.1} parent=0
    _
  %s10 = ssub.s32 1, %s8
  %s11 = scalar_select 0, %s10, %s8
  %s13 = sshll.u32 %s0, 4
  %s14 = int_to_ptr.vmem [resolvable:$true] %s13
  %16 = dma.vmem_to_smem %s14, 32, [#allocation5], [#allocation4]
  %18 = dma.done [#allocation4], 32
  %19 = sfence
  $region1: #{tpu_custom_call.1} parent=0
    #allocation6 [shape = 'u8[8192]{0}', space=vmem, size = 0x2000, scoped, tag = 'output window, operand 0']
    #allocation7 [shape = 's32[2]{0}', space=sflag, size = 0x8, scoped, tag = 'scoped memory for tpu_custom_call.1']
    %20 = vsyncpa [#allocation7], 0
    %s21 = scalar_lea.sflag [#allocation7], 1
    %22 = vsyncpa %s21, 0
    loop: start=0, step=1, limit=4
    $region2: #{tpu_custom_call.1} parent=1 // loop_pre_header
      _
    $region3: #{tpu_custom_call.1} parent=1 // loop_header
      %s24 = sphi 0, %s28
      %p25 = scmp.ge.s32.totalorder %s24, 4
      %s32 = sphi 0, %s32
      %s34 = sphi 0, %s32
      %s35 = sphi 0, %s34
      %s49 = sphi 0, %s35
      %s53 = sphi 0, %s53
      %s55 = sphi 0, %s53
      %s56 = sphi 0, %s55
      %s70 = sphi 0, %s56
      %s76 = sphi 0, %s78
      %s79 = sphi 0, %s76
      %s80 = sphi 0, %s79
      %s96 = sphi 0, %s80
      %s100 = sphi 0, %s100
      %s102 = sphi 0, %s100
      %s103 = sphi 0, %s102
      %s117 = sphi 0, %s103
      %s121 = sphi 0, %s121
      %s123 = sphi 0, %s121
      %s124 = sphi 0, %s123
      %s138 = sphi 0, %s124
      %s144 = sphi 0, %s146
      %s147 = sphi 0, %s144
      %s148 = sphi 0, %s147
      %s164 = sphi 0, %s148
    $region4: #{tpu_custom_call.1} parent=1 // loop_header_branch
      %27 = sbr.rel (%p25) target = $region8
    $region5: #{tpu_custom_call.1} parent=1 // loop_body
      %s29 = ssub.s32 %s24, 1
      %s30 = ssub.s32 %s24, 2
      %s31 = sadd.s32 %s24, 1
      %s33 = sadd.s32 %s32, 1
      %p36 = scmp.eq.s32.totalorder %s24, 1
      %p37 = scmp.ne.s32.totalorder %s32, %s34
      %p38 = scmp.eq.s32.totalorder %s24, 0
      %p39 = por %p37, %p38
      %p40 = scmp.ne.s32.totalorder %s32, %s34
      %p41 = scmp.eq.s32.totalorder %s29, 1
      %p42 = por %p40, %p41
      %p43 = scmp.ne.s32.totalorder %s34, %s35
      %p44 = scmp.eq.s32.totalorder %s29, 0
      %p45 = por %p43, %p44
      %p46 = scmp.ne.s32.totalorder %s34, %s35
      %p47 = scmp.eq.s32.totalorder %s30, 1
      %p48 = por %p46, %p47
      %p50 = scmp.ne.s32.totalorder %s35, %s49
      %p51 = scmp.eq.s32.totalorder %s30, 0
      %p52 = por %p50, %p51
      %s54 = sadd.s32 %s53, 1
      %p57 = scmp.eq.s32.totalorder %s24, 1
      %p58 = scmp.ne.s32.totalorder %s53, %s55
      %p59 = scmp.eq.s32.totalorder %s24, 0
      %p60 = por %p58, %p59
      %p61 = scmp.ne.s32.totalorder %s53, %s55
      %p62 = scmp.eq.s32.totalorder %s29, 1
      %p63 = por %p61, %p62
      %p64 = scmp.ne.s32.totalorder %s55, %s56
      %p65 = scmp.eq.s32.totalorder %s29, 0
      %p66 = por %p64, %p65
      %p67 = scmp.ne.s32.totalorder %s55, %s56
      %p68 = scmp.eq.s32.totalorder %s30, 1
      %p69 = por %p67, %p68
      %p71 = scmp.ne.s32.totalorder %s56, %s70
      %p72 = scmp.eq.s32.totalorder %s30, 0
      %p73 = por %p71, %p72
      %s74 = ssub.s32 %s24, %s31
      %p75 = scmp.eq.s32.totalorder %s74, 0
      %s77 = sadd.s32 %s76, 1
      %s78 = scalar_select %p75, %s76, %s77
      %p81 = pneg %p75
      %p82 = scmp.eq.s32.totalorder %s24, 1
      %p83 = por %p81, %p82
      %p84 = scmp.ne.s32.totalorder %s76, %s79
      %p85 = scmp.eq.s32.totalorder %s24, 0
      %p86 = por %p84, %p85
      %p87 = scmp.ne.s32.totalorder %s76, %s79
      %p88 = scmp.eq.s32.totalorder %s29, 1
      %p89 = por %p87, %p88
      %p90 = scmp.ne.s32.totalorder %s79, %s80
      %p91 = scmp.eq.s32.totalorder %s29, 0
      %p92 = por %p90, %p91
      %p93 = scmp.ne.s32.totalorder %s79, %s80
      %p94 = scmp.eq.s32.totalorder %s30, 1
      %p95 = por %p93, %p94
      %p97 = scmp.ne.s32.totalorder %s80, %s96
      %p98 = scmp.eq.s32.totalorder %s30, 0
      %p99 = por %p97, %p98
      %s101 = sadd.s32 %s100, 1
      %p104 = scmp.eq.s32.totalorder %s24, 1
      %p105 = scmp.ne.s32.totalorder %s100, %s102
      %p106 = scmp.eq.s32.totalorder %s24, 0
      %p107 = por %p105, %p106
      %p108 = scmp.ne.s32.totalorder %s100, %s102
      %p109 = scmp.eq.s32.totalorder %s29, 1
      %p110 = por %p108, %p109
      %p111 = scmp.ne.s32.totalorder %s102, %s103
      %p112 = scmp.eq.s32.totalorder %s29, 0
      %p113 = por %p111, %p112
      %p114 = scmp.ne.s32.totalorder %s102, %s103
      %p115 = scmp.eq.s32.totalorder %s30, 1
      %p116 = por %p114, %p115
      %p118 = scmp.ne.s32.totalorder %s103, %s117
      %p119 = scmp.eq.s32.totalorder %s30, 0
      %p120 = por %p118, %p119
      %s122 = sadd.s32 %s121, 1
      %p125 = scmp.eq.s32.totalorder %s24, 1
      %p126 = scmp.ne.s32.totalorder %s121, %s123
      %p127 = scmp.eq.s32.totalorder %s24, 0
      %p128 = por %p126, %p127
      %p129 = scmp.ne.s32.totalorder %s121, %s123
      %p130 = scmp.eq.s32.totalorder %s29, 1
      %p131 = por %p129, %p130
      %p132 = scmp.ne.s32.totalorder %s123, %s124
      %p133 = scmp.eq.s32.totalorder %s29, 0
      %p134 = por %p132, %p133
      %p135 = scmp.ne.s32.totalorder %s123, %s124
      %p136 = scmp.eq.s32.totalorder %s30, 1
      %p137 = por %p135, %p136
      %p139 = scmp.ne.s32.totalorder %s124, %s138
      %p140 = scmp.eq.s32.totalorder %s30, 0
      %p141 = por %p139, %p140
      %s142 = ssub.s32 %s24, %s31
      %p143 = scmp.eq.s32.totalorder %s142, 0
      %s145 = sadd.s32 %s144, 1
      %s146 = scalar_select %p143, %s144, %s145
      %p149 = pneg %p143
      %p150 = scmp.eq.s32.totalorder %s24, 1
      %p151 = por %p149, %p150
      %p152 = scmp.ne.s32.totalorder %s144, %s147
      %p153 = scmp.eq.s32.totalorder %s24, 0
      %p154 = por %p152, %p153
      %p155 = scmp.ne.s32.totalorder %s144, %s147
      %p156 = scmp.eq.s32.totalorder %s29, 1
      %p157 = por %p155, %p156
      %p158 = scmp.ne.s32.totalorder %s147, %s148
      %p159 = scmp.eq.s32.totalorder %s29, 0
      %p160 = por %p158, %p159
      %p161 = scmp.ne.s32.totalorder %s147, %s148
      %p162 = scmp.eq.s32.totalorder %s30, 1
      %p163 = por %p161, %p162
      %p165 = scmp.ne.s32.totalorder %s148, %s164
      %p166 = scmp.eq.s32.totalorder %s30, 0
      %p167 = por %p165, %p166
      %p168 = scmp.le.s32.totalorder 1, %s24
      %p169 = scmp.lt.s32.totalorder %s24, 3
      %p170 = pnand %p168, %p169
      %p171 = pneg %p170
      // Predicated region
      $region9: #{tpu_custom_call.1} parent=5 // pred_check
        _
      $region10: #{tpu_custom_call.1} parent=5 // pred_check_branch
        %173 = sbr.rel (%p170) target = $region12
      $region11: #{tpu_custom_call.1} parent=5 // pred_region
        %s174 = ssub.s32 %s24, 1
        // Predicated region
        $region13: #{tpu_custom_call.1} parent=11 // pred_check
          %p175 = pneg %p45
        $region14: #{tpu_custom_call.1} parent=11 // pred_check_branch
          %177 = sbr.rel (%p175) target = $region16
        $region15: #{tpu_custom_call.1} parent=11 // pred_region
          _
        $region16: #{tpu_custom_call.1} parent=11 // pred_fallthru
          _
        // Predicated region
        $region17: #{tpu_custom_call.1} parent=11 // pred_check
          %p178 = pneg %p66
        $region18: #{tpu_custom_call.1} parent=11 // pred_check_branch
          %180 = sbr.rel (%p178) target = $region20
        $region19: #{tpu_custom_call.1} parent=11 // pred_region
          _
        $region20: #{tpu_custom_call.1} parent=11 // pred_fallthru
          _
        // Predicated region
        $region21: #{tpu_custom_call.1} parent=11 // pred_check
          %p181 = pneg %p113
        $region22: #{tpu_custom_call.1} parent=11 // pred_check_branch
          %183 = sbr.rel (%p181) target = $region24
        $region23: #{tpu_custom_call.1} parent=11 // pred_region
          _
        $region24: #{tpu_custom_call.1} parent=11 // pred_fallthru
          _
        // Predicated region
        $region25: #{tpu_custom_call.1} parent=11 // pred_check
          %p184 = pneg %p134
        $region26: #{tpu_custom_call.1} parent=11 // pred_check_branch
          %186 = sbr.rel (%p184) target = $region28
        $region27: #{tpu_custom_call.1} parent=11 // pred_region
          _
        $region28: #{tpu_custom_call.1} parent=11 // pred_fallthru
          _
      $region12: #{tpu_custom_call.1} parent=5 // pred_fallthru
        _
      %p187 = scmp.lt.s32.totalorder %s24, 2
      // Predicated region
      $region29: #{tpu_custom_call.1} parent=5 // pred_check
        %p188 = pneg %p187
      $region30: #{tpu_custom_call.1} parent=5 // pred_check_branch
        %190 = sbr.rel (%p188) target = $region32
      $region31: #{tpu_custom_call.1} parent=5 // pred_region
        // Predicated region
        $region33: #{tpu_custom_call.1} parent=31 // pred_check
          %p191 = pneg %p86
        $region34: #{tpu_custom_call.1} parent=31 // pred_check_branch
          %193 = sbr.rel (%p191) target = $region36
        $region35: #{tpu_custom_call.1} parent=31 // pred_region
          %p194 = scmp.lt.s32.totalorder %s24, 1
          %s195 = scalar_select %p194, %s24, 1
          %s196 = smul.addr %s195, 8
          %s197 = scalar_lea.vmem %s4, %s196
        $region36: #{tpu_custom_call.1} parent=31 // pred_fallthru
          _
      $region32: #{tpu_custom_call.1} parent=5 // pred_fallthru
        _
      %p198 = scmp.le.s32.totalorder 1, %s24
      %p199 = scmp.lt.s32.totalorder %s24, 3
      %p200 = pnand %p198, %p199
      %p201 = pneg %p200
      // Predicated region
      $region37: #{tpu_custom_call.1} parent=5 // pred_check
        _
      $region38: #{tpu_custom_call.1} parent=5 // pred_check_branch
        %203 = sbr.rel (%p200) target = $region40
      $region39: #{tpu_custom_call.1} parent=5 // pred_region
        %s204 = ssub.s32 %s24, 1
        %p205 = pneg %p45
        %p206 = pneg %p42
        %p207 = pneg %p66
        %p208 = pneg %p63
        %p209 = scmp.lt.s32.totalorder %s29, 1
        %s210 = scalar_select %p209, %s29, 1
        %s211 = smul.addr %s210, 8
        %s212 = scalar_lea.vmem %s4, %s211
        %p213 = pneg %p92
        %p214 = pneg %p89
        %p215 = pneg %p113
        %p216 = pneg %p110
        %p217 = pneg %p134
        %p218 = pneg %p131
        %p219 = pneg %p160
        %p220 = pneg %p157
        %s221 = sand.u32 %s147, 1
        %s222 = scalar_lea.sflag [#allocation7], %s221
        %s223 = sand.u32 %s147, 1
        %s224 = smul.addr %s223, 8
        %s225 = scalar_lea.vmem [#allocation6], %s224
        %p226 = scmp.lt.s32.totalorder %s29, 1
        %s227 = scalar_select %p226, %s29, 1
        %s228 = smul.addr %s227, 8
        %s229 = scalar_lea.vmem %s4, %s228
        %v230 = vld [vmem:[%s5] sm:$0x1]
        %v231 = vld [vmem:[%s6] sm:$0x1]
        %v232 = vld [vmem:[%s2] sm:$0x1]
        %v233 = vld [vmem:[%s2 + $0x1] sm:$0x1]
        %v234 = vsub.f32 %v233, %v232
        %s235 = smul.u32 %s29, 128
        %s236 = sld [smem:[#allocation5 + %s235]]
        %s237 = scalar_lea.hbm %s1, %s236
        // Predicated region
        $region41: #{tpu_custom_call.1} parent=39 // pred_check
          _
        $region42: #{tpu_custom_call.1} parent=39 // pred_check_branch
          %239 = sbr.rel target = $region44
        $region43: #{tpu_custom_call.1} parent=39 // pred_region
          %240 = sst [smem:[#allocation10]] [#allocation9]
          %241 = sst [smem:[#allocation11]] [#allocation8]
        $region44: #{tpu_custom_call.1} parent=39 // pred_fallthru
          _
        %243 = shalt.err (0)
        %s245 = sshll.u32 %s237, 4
        %s246 = int_to_ptr.hbm [resolvable:$true] %s245
        %s247 = sshll.u32 [#allocation2], 4
        %s248 = int_to_ptr.vmem [resolvable:$true] %s247
        %250 = dma.hbm_to_vmem [thread:$0]  %s246, 16, %s248, [#allocation3]
        %s251 = sadd.s32 %s235, 1
        %s252 = sld [smem:[#allocation5 + %s251]]
        %s253 = scalar_lea.hbm %s1, %s252
        %s254 = scalar_lea.vmem [#allocation2], 1
        // Predicated region
        $region45: #{tpu_custom_call.1} parent=39 // pred_check
          _
        $region46: #{tpu_custom_call.1} parent=39 // pred_check_branch
          %256 = sbr.rel target = $region48
        $region47: #{tpu_custom_call.1} parent=39 // pred_region
          %257 = sst [smem:[#allocation10]] [#allocation13]
          %258 = sst [smem:[#allocation11]] [#allocation12]
        $region48: #{tpu_custom_call.1} parent=39 // pred_fallthru
          _
        %260 = shalt.err (0)
        %s262 = sshll.u32 %s253, 4
        %s263 = int_to_ptr.hbm [resolvable:$true] %s262
        %s264 = sshll.u32 %s254, 4
        %s265 = int_to_ptr.vmem [resolvable:$true] %s264
        %267 = dma.hbm_to_vmem [thread:$0]  %s263, 16, %s265, [#allocation3]
        %s268 = sadd.s32 %s235, 2
        %s269 = sld [smem:[#allocation5 + %s268]]
        %s270 = scalar_lea.hbm %s1, %s269
        %s271 = scalar_lea.vmem [#allocation2], 2
        // Predicated region
        $region49: #{tpu_custom_call.1} parent=39 // pred_check
          _
        $region50: #{tpu_custom_call.1} parent=39 // pred_check_branch
          %273 = sbr.rel target = $region52
        $region51: #{tpu_custom_call.1} parent=39 // pred_region
          %274 = sst [smem:[#allocation10]] [#allocation15]
          %275 = sst [smem:[#allocation11]] [#allocation14]
        $region52: #{tpu_custom_call.1} parent=39 // pred_fallthru
          _
        %277 = shalt.err (0)
        %s279 = sshll.u32 %s270, 4
        %s280 = int_to_ptr.hbm [resolvable:$true] %s279
        %s281 = sshll.u32 %s271, 4
        %s282 = int_to_ptr.vmem [resolvable:$true] %s281
        %284 = dma.hbm_to_vmem [thread:$0]  %s280, 16, %s282, [#allocation3]
        %s285 = sadd.s32 %s235, 3
        %s286 = sld [smem:[#allocation5 + %s285]]
        %s287 = scalar_lea.hbm %s1, %s286
        %s288 = scalar_lea.vmem [#allocation2], 3
        // Predicated region
        $region53: #{tpu_custom_call.1} parent=39 // pred_check
          _
        $region54: #{tpu_custom_call.1} parent=39 // pred_check_branch
          %290 = sbr.rel target = $region56
        $region55: #{tpu_custom_call.1} parent=39 // pred_region
          %291 = sst [smem:[#allocation10]] [#allocation17]
          %292 = sst [smem:[#allocation11]] [#allocation16]
        $region56: #{tpu_custom_call.1} parent=39 // pred_fallthru
          _
        %294 = shalt.err (0)
        %s296 = sshll.u32 %s287, 4
        %s297 = int_to_ptr.hbm [resolvable:$true] %s296
        %s298 = sshll.u32 %s288, 4
        %s299 = int_to_ptr.vmem [resolvable:$true] %s298
        %301 = dma.hbm_to_vmem [thread:$0]  %s297, 16, %s299, [#allocation3]
        %s302 = sadd.s32 %s235, 4
        %s303 = sld [smem:[#allocation5 + %s302]]
        %s304 = scalar_lea.hbm %s1, %s303
        %s305 = scalar_lea.vmem [#allocation2], 4
        // Predicated region
        $region57: #{tpu_custom_call.1} parent=39 // pred_check
          _
        $region58: #{tpu_custom_call.1} parent=39 // pred_check_branch
          %307 = sbr.rel target = $region60
        $region59: #{tpu_custom_call.1} parent=39 // pred_region
          %308 = sst [smem:[#allocation10]] [#allocation19]
          %309 = sst [smem:[#allocation11]] [#allocation18]
        $region60: #{tpu_custom_call.1} parent=39 // pred_fallthru
          _
        %311 = shalt.err (0)
        %s313 = sshll.u32 %s304, 4
        %s314 = int_to_ptr.hbm [resolvable:$true] %s313
        %s315 = sshll.u32 %s305, 4
        %s316 = int_to_ptr.vmem [resolvable:$true] %s315
        %318 = dma.hbm_to_vmem [thread:$0]  %s314, 16, %s316, [#allocation3]
        %s319 = sadd.s32 %s235, 5
        %s320 = sld [smem:[#allocation5 + %s319]]
        %s321 = scalar_lea.hbm %s1, %s320
        %s322 = scalar_lea.vmem [#allocation2], 5
        // Predicated region
        $region61: #{tpu_custom_call.1} parent=39 // pred_check
          _
        $region62: #{tpu_custom_call.1} parent=39 // pred_check_branch
          %324 = sbr.rel target = $region64
        $region63: #{tpu_custom_call.1} parent=39 // pred_region
          %325 = sst [smem:[#allocation10]] [#allocation21]
          %326 = sst [smem:[#allocation11]] [#allocation20]
        $region64: #{tpu_custom_call.1} parent=39 // pred_fallthru
          _
        %328 = shalt.err (0)
        %s330 = sshll.u32 %s321, 4
        %s331 = int_to_ptr.hbm [resolvable:$true] %s330
        %s332 = sshll.u32 %s322, 4
        %s333 = int_to_ptr.vmem [resolvable:$true] %s332
        %335 = dma.hbm_to_vmem [thread:$0]  %s331, 16, %s333, [#allocation3]
        %s336 = sadd.s32 %s235, 6
        %s337 = sld [smem:[#allocation5 + %s336]]
        %s338 = scalar_lea.hbm %s1, %s337
        %s339 = scalar_lea.vmem [#allocation2], 6
        // Predicated region
        $region65: #{tpu_custom_call.1} parent=39 // pred_check
          _
        $region66: #{tpu_custom_call.1} parent=39 // pred_check_branch
          %341 = sbr.rel target = $region68
        $region67: #{tpu_custom_call.1} parent=39 // pred_region
          %342 = sst [smem:[#allocation10]] [#allocation23]
          %343 = sst [smem:[#allocation11]] [#allocation22]
        $region68: #{tpu_custom_call.1} parent=39 // pred_fallthru
          _
        %345 = shalt.err (0)
        %s347 = sshll.u32 %s338, 4
        %s348 = int_to_ptr.hbm [resolvable:$true] %s347
        %s349 = sshll.u32 %s339, 4
        %s350 = int_to_ptr.vmem [resolvable:$true] %s349
        %352 = dma.hbm_to_vmem [thread:$0]  %s348, 16, %s350, [#allocation3]
        %s353 = sadd.s32 %s235, 7
        %s354 = sld [smem:[#allocation5 + %s353]]
        %s355 = scalar_lea.hbm %s1, %s354
        %s356 = scalar_lea.vmem [#allocation2], 7
        // Predicated region
        $region69: #{tpu_custom_call.1} parent=39 // pred_check
          _
        $region70: #{tpu_custom_call.1} parent=39 // pred_check_branch
          %358 = sbr.rel target = $region72
        $region71: #{tpu_custom_call.1} parent=39 // pred_region
          %359 = sst [smem:[#allocation10]] [#allocation25]
          %360 = sst [smem:[#allocation11]] [#allocation24]
        $region72: #{tpu_custom_call.1} parent=39 // pred_fallthru
          _
        %362 = shalt.err (0)
        %s364 = sshll.u32 %s355, 4
        %s365 = int_to_ptr.hbm [resolvable:$true] %s364
        %s366 = sshll.u32 %s356, 4
        %s367 = int_to_ptr.vmem [resolvable:$true] %s366
        %369 = dma.hbm_to_vmem [thread:$0]  %s365, 16, %s367, [#allocation3]
        %s370 = smul.u32 8, 1
        %s371 = sshll.u32 %s370, 4
        %372 = dma.done [#allocation3], %s371
        %v373 = vld [vmem:[%s229] sm:$0xff]
        %v374 = vcvt.s32.f32 %v373
        %376 = vset.pattern.permute.xlu0 0
        %377 = vperm.xlu0 %376, %v374
        %v378 = vpop.permute.xlu0 %377
        %v380 = vperm.slane %v234, 0
        %v381 = vmul.f32 %v378, %v380
        %v382 = vperm.slane %v232, 0
        %v383 = vadd.f32 %v382, %v381
        %v384 = vld [vmem:[#allocation2] sm:$0xff]
        %v385 = vld [vmem:[%s3] sm:$0xff]
        %v386 = vadd.f32 %v384, %v385
        %v387 = vadd.f32 %v386, %v383
        %388 = vadd.xlane.f32.xlu0 %v387
        %v389 = vpop.xlane.xlu0 %388
        %v390 = vrcp.pop 128.0
        %v391 = vmul.f32 128.0, %v390
        %v392 = vsub.f32 1.0, %v391
        %v393 = vmul.f32 %v390, %v392
        %v394 = vadd.f32 %v390, %v393
        %vm395 = vweird.f32 %v390
        %v396 = vsel %vm395, %v390, %v394
        %v397 = vmul.f32 %v389, %v396
        %v398 = vsub.f32 %v387, %v397
        %v399 = vmul.f32 %v398, %v398
        %400 = vadd.xlane.f32.xlu0 %v399
        %v401 = vpop.xlane.xlu0 %400
        %v402 = vmul.f32 %v401, %v396
        %v403 = vadd.f32 %v402, 1e-12
        %v404 = vrsqrt.pop %v403
        %v405 = vmul.f32 %v404, %v403
        %v406 = vmul.f32 %v405, %v404
        %v407 = vmul.f32 0.5, %v406
        %v408 = vsub.f32 1.5, %v407
        %v409 = vmul.f32 %v404, %v408
        %vm410 = vweird.f32 %v403
        %vm411 = vweird.f32 %v404
        %vm412 = vmor %vm410, %vm411
        %v413 = vsel %vm412, %v404, %v409
        %v414 = vmul.f32 %v398, %v413
        %v416 = vperm.slane %v230, 0
        %v418 = vmul.f32 %v414, %v416
        %v420 = vperm.slane %v231, 0
        %v422 = vadd.f32 %v418, %v420
        %423 = vst [vmem:[%s225] sm:$0xff] %v422
        %s424 = sand.u32 %s147, 1
        %s425 = scalar_lea.sflag [#allocation7], %s424
        %s426 = sand.u32 %s147, 1
        %s427 = smul.addr %s426, 8
        %s428 = scalar_lea.vmem [#allocation6], %s427
        // Predicated region
        $region73: #{tpu_custom_call.1} parent=39 // pred_check
          %p429 = pneg %p157
        $region74: #{tpu_custom_call.1} parent=39 // pred_check_branch
          %431 = sbr.rel (%p429) target = $region76
        $region75: #{tpu_custom_call.1} parent=39 // pred_region
          %433 = vsyncadd %s425, 0
          %s434 = smul.addr %s29, 8
          %s435 = scalar_lea.hbm %s7, %s434
          %s437 = sshll.u32 %s428, 4
          %s438 = int_to_ptr.vmem [resolvable:$true] %s437
          %s439 = sshll.u32 %s435, 4
          %s440 = int_to_ptr.hbm [resolvable:$true] %s439
          %442 = dma.vmem_to_hbm [thread:$0]  %s438, 128, %s440, %s425
        $region76: #{tpu_custom_call.1} parent=39 // pred_fallthru
          _
      $region40: #{tpu_custom_call.1} parent=5 // pred_fallthru
        _
      %p443 = scmp.le.s32.totalorder 2, %s24
      // Predicated region
      $region77: #{tpu_custom_call.1} parent=5 // pred_check
        %p444 = pneg %p443
      $region78: #{tpu_custom_call.1} parent=5 // pred_check_branch
        %446 = sbr.rel (%p444) target = $region80
      $region79: #{tpu_custom_call.1} parent=5 // pred_region
        %s447 = ssub.s32 %s24, 2
        // Predicated region
        $region81: #{tpu_custom_call.1} parent=79 // pred_check
          %p448 = pneg %p163
        $region82: #{tpu_custom_call.1} parent=79 // pred_check_branch
          %450 = sbr.rel (%p448) target = $region84
        $region83: #{tpu_custom_call.1} parent=79 // pred_region
          %s451 = sand.u32 %s148, 1
          %s452 = scalar_lea.sflag [#allocation7], %s451
          %s453 = sand.u32 %s148, 1
          %s454 = smul.addr %s453, 8
          %s455 = scalar_lea.vmem [#allocation6], %s454
          %457 = dma.done %s452, 128
        $region84: #{tpu_custom_call.1} parent=79 // pred_fallthru
          _
      $region80: #{tpu_custom_call.1} parent=5 // pred_fallthru
        _
    $region6: #{tpu_custom_call.1} parent=1 // loop_footer
      %s28 = sadd.s32 1, %s24
    $region7: #{tpu_custom_call.1} parent=1 // loop_footer_branch
      %23 = sbr.rel target = $region3
    $region8: #{tpu_custom_call.1} parent=1 // loop_exit
      _
    %458 = vsyncpa [#allocation7], 1
    %s459 = scalar_lea.sflag [#allocation7], 1
    %460 = vsyncpa %s459, 1
  %461 = vsyncmov [#allocation3]
  %s462 = vpop.sfrf %461
  %p463 = scmp.eq.s32.totalorder %s462, 0
  %p464 = pneg %p463
  %466 = shalt.err (%p464)

</llo_original>
